<compile_context>
chip_gen: v7x
topology: tpu7x:2x2x1
jax: 0.10.0
libtpu: 0.0.40
codegen_flags: <defaults>
</compile_context>

<pallas_src>
import jax
import jax.numpy as jnp
from jax.experimental import pallas as pl
from jax.experimental.pallas import tpu as pltpu


SEG = 128      # lane width of each one-hot K-segment
P_OFF = 8      # offset of the `p` vocabulary inside segment 0 (vocab_r <= 8)


def _cond_emb_kernel(idx_ref, tbl_ref, o_ref):
    """One grid step handles TM rows.

    idx_ref: (TM, 4) int32  -- columns are (r, p, r_vel, p_vel)
    tbl_ref: (3*SEG, out_dim) f32 fused block-structured table
    o_ref:   (TM, out_dim) f32
    """
    tm = idx_ref.shape[0]
    idx = idx_ref[...]                                    # (TM, 4)

    # Single lane iota, reused for all four lookups (JAX does not CSE these).
    lane = jax.lax.broadcasted_iota(jnp.int32, (tm, SEG), 1)

    r = idx[:, 0:1]
    p = idx[:, 1:2]
    rv = idx[:, 2:3]
    pv = idx[:, 3:4]

    # One-hot segments; r and p share segment 0 (their table rows feed
    # disjoint output-column blocks, so the OR is safe).
    seg0 = ((lane == r) | (lane == (p + P_OFF))).astype(jnp.float32)
    seg1 = (lane == rv).astype(jnp.float32)
    seg2 = (lane == pv).astype(jnp.float32)
    onehot = jnp.concatenate([seg0, seg1, seg2], axis=1)  # (TM, 3*SEG)

    # One MXU pass produces the whole concatenated embedding row; one
    # lane-dense store.
    o_ref[...] = jnp.dot(onehot, tbl_ref[...],
                         preferred_element_type=jnp.float32)


def _build_fused_table(params, d4, out_dim):
    """Fuse the four embedding tables into one (3*SEG, out_dim) matrix."""
    vr, vp = params["emb_r"].shape[0], params["emb_p"].shape[0]
    vrv, vpv = params["emb_r_vel"].shape[0], params["emb_p_vel"].shape[0]
    assert vr <= P_OFF and P_OFF + vp <= SEG and vrv <= SEG and vpv <= SEG
    tbl = jnp.zeros((3 * SEG, out_dim), jnp.float32)
    tbl = tbl.at[0:vr, 0:d4].set(params["emb_r"].astype(jnp.float32))
    tbl = tbl.at[P_OFF:P_OFF + vp, d4:2 * d4].set(
        params["emb_p"].astype(jnp.float32))
    tbl = tbl.at[SEG:SEG + vrv, 2 * d4:3 * d4].set(
        params["emb_r_vel"].astype(jnp.float32))
    tbl = tbl.at[2 * SEG:2 * SEG + vpv, 3 * d4:4 * d4].set(
        params["emb_p_vel"].astype(jnp.float32))
    return tbl


def condition_embedding(r, p, r_vel, p_vel, params, *, tm=1024):
    """Pallas implementation of ConditionEmbedding.forward.

    r, p, r_vel, p_vel: integer index arrays of identical (arbitrary) shape.
    params: dict with 'emb_r' (5, D4), 'emb_p' (5, D4),
            'emb_r_vel' (128, D4), 'emb_p_vel' (128, D4).
    Returns float32 array of shape r.shape + (4*D4,).
    """
    lead_shape = r.shape
    N = int(r.size)
    d4 = params["emb_r"].shape[1]
    out_dim = 4 * d4
    k_pad = 3 * SEG

    # Pack the four index fields into one (N, 4) int32 array (one DMA/step).
    idx = jnp.stack(
        [r.reshape(N), p.reshape(N), r_vel.reshape(N), p_vel.reshape(N)],
        axis=-1).astype(jnp.int32)

    # Row tile: large for pipeline efficiency, shrunk for tiny inputs, always
    # a multiple of 8.  Ragged tails are handled with wrapper-side zero
    # padding (index 0 is valid; padded rows are sliced off below).
    tm_eff = max(8, min(tm, pl.cdiv(N, 8) * 8))
    n_tiles = pl.cdiv(N, tm_eff)
    n_pad = n_tiles * tm_eff
    if n_pad != N:
        idx = jnp.pad(idx, ((0, n_pad - N), (0, 0)))

    # Fused block-structured table (the concat in forward() becomes disjoint
    # column blocks of a single matmul).
    tbl = _build_fused_table(params, d4, out_dim)

    cost = pl.CostEstimate(
        flops=2 * n_pad * k_pad * out_dim,
        transcendentals=0,
        bytes_accessed=idx.size * 4 + tbl.size * 4 + n_pad * out_dim * 4,
    )

    out_flat = pl.pallas_call(
        _cond_emb_kernel,
        out_shape=jax.ShapeDtypeStruct((n_pad, out_dim), jnp.float32),
        grid_spec=pltpu.PrefetchScalarGridSpec(
            num_scalar_prefetch=0,
            grid=(n_tiles,),
            in_specs=[
                pl.BlockSpec((tm_eff, 4), lambda i: (i, 0)),
                # Constant block index -> table stays resident in VMEM.
                pl.BlockSpec((k_pad, out_dim), lambda i: (0, 0)),
            ],
            out_specs=pl.BlockSpec((tm_eff, out_dim), lambda i: (i, 0)),
        ),
        compiler_params=pltpu.CompilerParams(
            dimension_semantics=("parallel",)),
        cost_estimate=cost,
    )(idx, tbl)

    return out_flat[:N].reshape(*lead_shape, out_dim)


def condition_embedding_ref(r, p, r_vel, p_vel, params):
    """Pure-JAX reference (mirrors the PyTorch forward exactly)."""
    x1 = params["emb_r"][r]
    x2 = params["emb_p"][p]
    x3 = params["emb_r_vel"][r_vel]
    x4 = params["emb_p_vel"][p_vel]
    return jnp.concatenate((x1, x2, x3, x4), axis=-1)


if __name__ == "__main__":
    out_dim = 32          # each embedding is out_dim // 4 = 8
    B, S = 2, 8

    key = jax.random.PRNGKey(0)
    k_tr, k_tp, k_trv, k_tpv, k_r, k_p, k_rv, k_pv, k_more = jax.random.split(key, 9)

    # nn.Embedding default init: N(0, 1)
    params = {
        "emb_r":     jax.random.normal(k_tr,  (5,   out_dim // 4), jnp.float32),
        "emb_p":     jax.random.normal(k_tp,  (5,   out_dim // 4), jnp.float32),
        "emb_r_vel": jax.random.normal(k_trv, (128, out_dim // 4), jnp.float32),
        "emb_p_vel": jax.random.normal(k_tpv, (128, out_dim // 4), jnp.float32),
    }

    r     = jax.random.randint(k_r,  (B, S), 0, 5,   dtype=jnp.int32)
    p     = jax.random.randint(k_p,  (B, S), 0, 5,   dtype=jnp.int32)
    r_vel = jax.random.randint(k_rv, (B, S), 0, 128, dtype=jnp.int32)
    p_vel = jax.random.randint(k_pv, (B, S), 0, 128, dtype=jnp.int32)

    out = condition_embedding(r, p, r_vel, p_vel, params)
    jax.block_until_ready(out)
    ref = condition_embedding_ref(r, p, r_vel, p_vel, params)
    assert out.shape == (B, S, out_dim), out.shape
    assert jnp.allclose(out, ref, atol=1e-5, rtol=1e-5), "mismatch vs reference"

    # Second check: N not a multiple of the tile exercises the padded-tail path.
    B2, S2 = 3, 50
    k1, k2, k3, k4 = jax.random.split(k_more, 4)
    r2  = jax.random.randint(k1, (B2, S2), 0, 5,   dtype=jnp.int32)
    p2  = jax.random.randint(k2, (B2, S2), 0, 5,   dtype=jnp.int32)
    rv2 = jax.random.randint(k3, (B2, S2), 0, 128, dtype=jnp.int32)
    pv2 = jax.random.randint(k4, (B2, S2), 0, 128, dtype=jnp.int32)
    out2 = condition_embedding(r2, p2, rv2, pv2, params)
    jax.block_until_ready(out2)
    ref2 = condition_embedding_ref(r2, p2, rv2, pv2, params)
    assert out2.shape == (B2, S2, out_dim), out2.shape
    assert jnp.allclose(out2, ref2, atol=1e-5, rtol=1e-5), "mismatch (ragged N)"

    print("KERNEL_OK")
</pallas_src>

<mosaic_0001>
module attributes {stable_mosaic.version = 11 : i64} {
  func.func @_cond_emb_kernel(%arg0: i32, %arg1: memref<16x4xi32, #tpu.memory_space<vmem>>, %arg2: memref<384x32xf32, #tpu.memory_space<vmem>>, %arg3: memref<16x32xf32, #tpu.memory_space<vmem>>) attributes {dimension_semantics = [#tpu.dimension_semantics<parallel>], iteration_bounds = array<i64: 1>, scalar_prefetch = 0 : i64, scratch_operands = 0 : i64, tpu.core_type = #tpu.core_type<tc>, window_params = [{transform_indices = @transform_0, window_bounds = array<i64: 16, 4>}, {pipeline_mode = #tpu.pipeline_mode<synchronous>, transform_indices = @transform_1, window_bounds = array<i64: 384, 32>}, {transform_indices = @transform_2, window_bounds = array<i64: 16, 32>}]} {
    %c0 = arith.constant 0 : index
    %c0_0 = arith.constant 0 : index
    %0 = vector.load %arg1[%c0, %c0_0] : memref<16x4xi32, #tpu.memory_space<vmem>>, vector<16x4xi32>
    %1 = tpu.iota {dimensions = array<i32: 1>} : vector<16x128xi32>
    %2 = vector.extract_strided_slice %0 {offsets = [0, 0], sizes = [16, 1], strides = [1, 1]} : vector<16x4xi32> to vector<16x1xi32>
    %3 = vector.extract_strided_slice %0 {offsets = [0, 1], sizes = [16, 1], strides = [1, 1]} : vector<16x4xi32> to vector<16x1xi32>
    %4 = vector.extract_strided_slice %0 {offsets = [0, 2], sizes = [16, 1], strides = [1, 1]} : vector<16x4xi32> to vector<16x1xi32>
    %5 = vector.extract_strided_slice %0 {offsets = [0, 3], sizes = [16, 1], strides = [1, 1]} : vector<16x4xi32> to vector<16x1xi32>
    %6 = vector.broadcast %2 : vector<16x1xi32> to vector<16x128xi32>
    %7 = arith.cmpi eq, %1, %6 : vector<16x128xi32>
    %c8_i32 = arith.constant 8 : i32
    %8 = vector.broadcast %c8_i32 : i32 to vector<16x1xi32>
    %9 = arith.addi %3, %8 : vector<16x1xi32>
    %10 = vector.broadcast %9 : vector<16x1xi32> to vector<16x128xi32>
    %11 = arith.cmpi eq, %1, %10 : vector<16x128xi32>
    %12 = arith.ori %7, %11 : vector<16x128xi1>
    %13 = arith.extui %12 : vector<16x128xi1> to vector<16x128xi32>
    %14 = arith.sitofp %13 : vector<16x128xi32> to vector<16x128xf32>
    %15 = vector.broadcast %4 : vector<16x1xi32> to vector<16x128xi32>
    %16 = arith.cmpi eq, %1, %15 : vector<16x128xi32>
    %17 = arith.extui %16 : vector<16x128xi1> to vector<16x128xi32>
    %18 = arith.sitofp %17 : vector<16x128xi32> to vector<16x128xf32>
    %19 = vector.broadcast %5 : vector<16x1xi32> to vector<16x128xi32>
    %20 = arith.cmpi eq, %1, %19 : vector<16x128xi32>
    %21 = arith.extui %20 : vector<16x128xi1> to vector<16x128xi32>
    %22 = arith.sitofp %21 : vector<16x128xi32> to vector<16x128xf32>
    %23 = tpu.concatenate %14, %18, %22 in 1 : vector<16x128xf32>, vector<16x128xf32>, vector<16x128xf32> -> vector<16x384xf32>
    %c0_1 = arith.constant 0 : index
    %c0_2 = arith.constant 0 : index
    %24 = vector.load %arg2[%c0_1, %c0_2] : memref<384x32xf32, #tpu.memory_space<vmem>>, vector<384x32xf32>
    %cst = arith.constant dense<0.000000e+00> : vector<16x32xf32>
    %25 = tpu.matmul %23, %24, %cst {dimension_numbers = #tpu.dot_dimension_numbers<[1], [0], [0], [1], [0, 0, 1, 1], [], []>} : vector<16x384xf32>, vector<384x32xf32>, vector<16x32xf32> -> vector<16x32xf32>
    %c0_3 = arith.constant 0 : index
    %c0_4 = arith.constant 0 : index
    %26 = vector.load %arg3[%c0_3, %c0_4] : memref<16x32xf32, #tpu.memory_space<vmem>>, vector<16x32xf32>
    tpu.vector_store %arg3[%c0_3, %c0_4], %25 {strides = array<i32>} : memref<16x32xf32, #tpu.memory_space<vmem>>, vector<16x32xf32>,
    return
  }
  func.func @transform_0(%arg0: i32) -> (i32, i32) {
    %c0_i32 = arith.constant 0 : i32
    %c0_i32_0 = arith.constant 0 : i32
    return %arg0, %c0_i32 : i32, i32
  }
  func.func @transform_1(%arg0: i32) -> (i32, i32) {
    %c0_i32 = arith.constant 0 : i32
    %c0_i32_0 = arith.constant 0 : i32
    %c0_i32_1 = arith.constant 0 : i32
    return %c0_i32, %c0_i32_0 : i32, i32
  }
  func.func @transform_2(%arg0: i32) -> (i32, i32) {
    %c0_i32 = arith.constant 0 : i32
    %c0_i32_0 = arith.constant 0 : i32
    return %arg0, %c0_i32 : i32, i32
  }
}

</mosaic_0001>

<llo_original>
// kernel: tpu_custom_call.1
$region0: #{tpu_custom_call.1}
  #allocation0 [shape = 'u32[]', space=smem, size = 0x4, offset = 0x4, fixed_abs, tag = 'smem constant byte address 0x4 - core index']
  #allocation1 [shape = 'u32[144,128]{1,0:T(1,128)}', space=vmem, size = 0x12000, scoped, tag = 'internal scratch']
  %s0 = inlined_call_operand.vmem [shape: s32[16,4], index: 0, kind: input, shape index: {}]
  %s1 = inlined_call_operand.vmem [shape: f32[384,32], index: 1, kind: input, shape index: {}]
  %s2 = inlined_call_operand.hbm [shape: f32[16,32], index: 2, kind: output, shape index: {}]
  %s3 = sld [smem:[#allocation0]]
  $region18: #{tpu_custom_call.1} parent=0
    _
  %s5 = ssub.s32 1, %s3
  %s6 = scalar_select 0, %s5, %s3
  $region1: #{tpu_custom_call.1} parent=0
    #allocation2 [shape = 'u8[8192]{0}', space=vmem, size = 0x2000, scoped, tag = 'output window, operand 0, single buffered']
    #allocation3 [shape = 's32[1]{0}', space=sflag, size = 0x4, scoped, tag = 'scoped memory for tpu_custom_call.1']
    %7 = vsyncpa [#allocation3], 0
    // Predicated region
    $region2: #{tpu_custom_call.1} parent=1 // pred_check
      _
    $region3: #{tpu_custom_call.1} parent=1 // pred_check_branch
      %9 = sbr.rel (0) target = $region5
    $region4: #{tpu_custom_call.1} parent=1 // pred_region
      _
    $region5: #{tpu_custom_call.1} parent=1 // pred_fallthru
      _
    // Predicated region
    $region6: #{tpu_custom_call.1} parent=1 // pred_check
      _
    $region7: #{tpu_custom_call.1} parent=1 // pred_check_branch
      %11 = sbr.rel (0) target = $region9
    $region8: #{tpu_custom_call.1} parent=1 // pred_region
      _
    $region9: #{tpu_custom_call.1} parent=1 // pred_fallthru
      _
    %v12 = vld [vmem:[%s0] sm:$0xff]
    %v13 = vld [vmem:[%s0 + $0x8] sm:$0xff]
    %v14 = vlaneseq
    %v15 = vand.u32 %v14, 127
    %16 = vset.pattern.permute.xlu0 0
    %17 = vperm.xlu0 %16, %v12
    %v18 = vpop.permute.xlu0 %17
    %19 = vset.pattern.permute.xlu0 0
    %20 = vperm.xlu0 %19, %v13
    %v21 = vpop.permute.xlu0 %20
    %vm22 = vcmp.eq.s32.totalorder %v15, %v18
    %vm23 = vcmp.eq.s32.totalorder %v15, %v21
    %v24 = vadd.s32 %v12, 8
    %v25 = vadd.s32 %v13, 8
    %26 = vset.pattern.permute.xlu0 1
    %27 = vperm.xlu0 %26, %v24
    %v28 = vpop.permute.xlu0 %27
    %29 = vset.pattern.permute.xlu0 1
    %30 = vperm.xlu0 %29, %v25
    %v31 = vpop.permute.xlu0 %30
    %vm32 = vcmp.eq.s32.totalorder %v15, %v28
    %vm33 = vcmp.eq.s32.totalorder %v15, %v31
    %vm34 = vmor %vm22, %vm32
    %vm35 = vmor %vm23, %vm33
    %v36 = vsel %vm34, 1, 0
    %v37 = vsel %vm35, 1, 0
    %v38 = vcvt.s32.f32 %v36
    %v39 = vcvt.s32.f32 %v37
    %40 = vset.pattern.permute.xlu0 2
    %41 = vperm.xlu0 %40, %v12
    %v42 = vpop.permute.xlu0 %41
    %43 = vset.pattern.permute.xlu0 2
    %44 = vperm.xlu0 %43, %v13
    %v45 = vpop.permute.xlu0 %44
    %vm46 = vcmp.eq.s32.totalorder %v15, %v42
    %vm47 = vcmp.eq.s32.totalorder %v15, %v45
    %v48 = vsel %vm46, 1, 0
    %v49 = vsel %vm47, 1, 0
    %v50 = vcvt.s32.f32 %v48
    %v51 = vcvt.s32.f32 %v49
    %52 = vset.pattern.permute.xlu0 3
    %53 = vperm.xlu0 %52, %v12
    %v54 = vpop.permute.xlu0 %53
    %55 = vset.pattern.permute.xlu0 3
    %56 = vperm.xlu0 %55, %v13
    %v57 = vpop.permute.xlu0 %56
    %vm58 = vcmp.eq.s32.totalorder %v15, %v54
    %vm59 = vcmp.eq.s32.totalorder %v15, %v57
    %v60 = vsel %vm58, 1, 0
    %v61 = vsel %vm59, 1, 0
    %v62 = vcvt.s32.f32 %v60
    %v63 = vcvt.s32.f32 %v61
    %v64 = vld [vmem:[%s1] sm:$0xff]
    %v65 = vld [vmem:[%s1 + $0x8] sm:$0xff]
    %v66 = vld [vmem:[%s1 + $0x10] sm:$0xff]
    %v67 = vld [vmem:[%s1 + $0x18] sm:$0xff]
    %v68 = vld [vmem:[%s1 + $0x20] sm:$0xff]
    %v69 = vld [vmem:[%s1 + $0x28] sm:$0xff]
    %v70 = vld [vmem:[%s1 + $0x30] sm:$0xff]
    %v71 = vld [vmem:[%s1 + $0x38] sm:$0xff]
    %v72 = vld [vmem:[%s1 + $0x40] sm:$0xff]
    %v73 = vld [vmem:[%s1 + $0x48] sm:$0xff]
    %v74 = vld [vmem:[%s1 + $0x50] sm:$0xff]
    %v75 = vld [vmem:[%s1 + $0x58] sm:$0xff]
    %v76 = vld [vmem:[%s1 + $0x60] sm:$0xff]
    %v77 = vld [vmem:[%s1 + $0x68] sm:$0xff]
    %v78 = vld [vmem:[%s1 + $0x70] sm:$0xff]
    %v79 = vld [vmem:[%s1 + $0x78] sm:$0xff]
    %v80 = vld [vmem:[%s1 + $0x80] sm:$0xff]
    %v81 = vld [vmem:[%s1 + $0x88] sm:$0xff]
    %v82 = vld [vmem:[%s1 + $0x90] sm:$0xff]
    %v83 = vld [vmem:[%s1 + $0x98] sm:$0xff]
    %v84 = vld [vmem:[%s1 + $0xa0] sm:$0xff]
    %v85 = vld [vmem:[%s1 + $0xa8] sm:$0xff]
    %v86 = vld [vmem:[%s1 + $0xb0] sm:$0xff]
    %v87 = vld [vmem:[%s1 + $0xb8] sm:$0xff]
    %v88 = vld [vmem:[%s1 + $0xc0] sm:$0xff]
    %v89 = vld [vmem:[%s1 + $0xc8] sm:$0xff]
    %v90 = vld [vmem:[%s1 + $0xd0] sm:$0xff]
    %v91 = vld [vmem:[%s1 + $0xd8] sm:$0xff]
    %v92 = vld [vmem:[%s1 + $0xe0] sm:$0xff]
    %v93 = vld [vmem:[%s1 + $0xe8] sm:$0xff]
    %v94 = vld [vmem:[%s1 + $0xf0] sm:$0xff]
    %v95 = vld [vmem:[%s1 + $0xf8] sm:$0xff]
    %v96 = vld [vmem:[%s1 + $0x100] sm:$0xff]
    %v97 = vld [vmem:[%s1 + $0x108] sm:$0xff]
    %v98 = vld [vmem:[%s1 + $0x110] sm:$0xff]
    %v99 = vld [vmem:[%s1 + $0x118] sm:$0xff]
    %v100 = vld [vmem:[%s1 + $0x120] sm:$0xff]
    %v101 = vld [vmem:[%s1 + $0x128] sm:$0xff]
    %v102 = vld [vmem:[%s1 + $0x130] sm:$0xff]
    %v103 = vld [vmem:[%s1 + $0x138] sm:$0xff]
    %v104 = vld [vmem:[%s1 + $0x140] sm:$0xff]
    %v105 = vld [vmem:[%s1 + $0x148] sm:$0xff]
    %v106 = vld [vmem:[%s1 + $0x150] sm:$0xff]
    %v107 = vld [vmem:[%s1 + $0x158] sm:$0xff]
    %v108 = vld [vmem:[%s1 + $0x160] sm:$0xff]
    %v109 = vld [vmem:[%s1 + $0x168] sm:$0xff]
    %v110 = vld [vmem:[%s1 + $0x170] sm:$0xff]
    %v111 = vld [vmem:[%s1 + $0x178] sm:$0xff]
    %112 = vmatprep.subr.mxu0 0.0
    %113 = vmatpush1.msra.mxu0 %v64
    %114 = vmatprep.subr.mxu0 0.0
    %115 = vmatpush1.msra.mxu0 %v65
    %116 = vmatprep.subr.mxu0 0.0
    %117 = vmatpush1.msra.mxu0 %v66
    %118 = vmatprep.subr.mxu0 0.0
    %119 = vmatpush1.msra.mxu0 %v67
    %120 = vmatprep.subr.mxu0 0.0
    %121 = vmatpush1.msra.mxu0 %v68
    %122 = vmatprep.subr.mxu0 0.0
    %123 = vmatpush1.msra.mxu0 %v69
    %124 = vmatprep.subr.mxu0 0.0
    %125 = vmatpush1.msra.mxu0 %v70
    %126 = vmatprep.subr.mxu0 0.0
    %127 = vmatpush1.msra.mxu0 %v71
    %128 = vmatprep.subr.mxu0 0.0
    %129 = vmatpush1.msra.mxu0 %v72
    %130 = vmatprep.subr.mxu0 0.0
    %131 = vmatpush1.msra.mxu0 %v73
    %132 = vmatprep.subr.mxu0 0.0
    %133 = vmatpush1.msra.mxu0 %v74
    %134 = vmatprep.subr.mxu0 0.0
    %135 = vmatpush1.msra.mxu0 %v75
    %136 = vmatprep.subr.mxu0 0.0
    %137 = vmatpush1.msra.mxu0 %v76
    %138 = vmatprep.subr.mxu0 0.0
    %139 = vmatpush1.msra.mxu0 %v77
    %140 = vmatprep.subr.mxu0 0.0
    %141 = vmatpush1.msra.mxu0 %v78
    %142 = vmatprep.subr.mxu0 0.0
    %143 = vmatpush1.msra.mxu0 %v79
    %144 = vmatprep.subr.mxu0 0.0
    %145 = vmatpush1.msra.mxu0 %v80
    %146 = vmatprep.subr.mxu0 0.0
    %147 = vmatpush1.msra.mxu0 %v81
    %148 = vmatprep.subr.mxu0 0.0
    %149 = vmatpush1.msra.mxu0 %v82
    %150 = vmatprep.subr.mxu0 0.0
    %151 = vmatpush1.msra.mxu0 %v83
    %152 = vmatprep.subr.mxu0 0.0
    %153 = vmatpush1.msra.mxu0 %v84
    %154 = vmatprep.subr.mxu0 0.0
    %155 = vmatpush1.msra.mxu0 %v85
    %156 = vmatprep.subr.mxu0 0.0
    %157 = vmatpush1.msra.mxu0 %v86
    %158 = vmatprep.subr.mxu0 0.0
    %159 = vmatpush1.msra.mxu0 %v87
    %160 = vmatprep.subr.mxu0 0.0
    %161 = vmatpush1.msra.mxu0 %v88
    %162 = vmatprep.subr.mxu0 0.0
    %163 = vmatpush1.msra.mxu0 %v89
    %164 = vmatprep.subr.mxu0 0.0
    %165 = vmatpush1.msra.mxu0 %v90
    %166 = vmatprep.subr.mxu0 0.0
    %167 = vmatpush1.msra.mxu0 %v91
    %168 = vmatprep.subr.mxu0 0.0
    %169 = vmatpush1.msra.mxu0 %v92
    %170 = vmatprep.subr.mxu0 0.0
    %171 = vmatpush1.msra.mxu0 %v93
    %172 = vmatprep.subr.mxu0 0.0
    %173 = vmatpush1.msra.mxu0 %v94
    %174 = vmatprep.subr.mxu0 0.0
    %175 = vmatpush1.msra.mxu0 %v95
    %176 = vmatprep.mubr.f32.mxu0 %v50
    %177 = vmatmul.mubr.f32.gmra.mrb[0].mxu0 %v38
    %v178 = vpop.f32.mrb[0].mxu0
    %v179 = vadd.f32 0.0, %v178
    %v180 = vpop.f32.mrb[0].mxu0
    %181 = vmatprep.mubr.f32.mxu0 %v51
    %182 = vmatmul.mubr.f32.gmra.mrb[0].mxu0 %v39
    %v183 = vpop.f32.mrb[0].mxu0
    %v184 = vadd.f32 0.0, %v183
    %v185 = vpop.f32.mrb[0].mxu0
    %186 = vdwg.mxu0
    %187 = vmatprep.subr.mxu0 0.0
    %188 = vmatpush1.msra.mxu0 %v96
    %189 = vmatprep.subr.mxu0 0.0
    %190 = vmatpush1.msra.mxu0 %v97
    %191 = vmatprep.subr.mxu0 0.0
    %192 = vmatpush1.msra.mxu0 %v98
    %193 = vmatprep.subr.mxu0 0.0
    %194 = vmatpush1.msra.mxu0 %v99
    %195 = vmatprep.subr.mxu0 0.0
    %196 = vmatpush1.msra.mxu0 %v100
    %197 = vmatprep.subr.mxu0 0.0
    %198 = vmatpush1.msra.mxu0 %v101
    %199 = vmatprep.subr.mxu0 0.0
    %200 = vmatpush1.msra.mxu0 %v102
    %201 = vmatprep.subr.mxu0 0.0
    %202 = vmatpush1.msra.mxu0 %v103
    %203 = vmatprep.subr.mxu0 0.0
    %204 = vmatpush1.msra.mxu0 %v104
    %205 = vmatprep.subr.mxu0 0.0
    %206 = vmatpush1.msra.mxu0 %v105
    %207 = vmatprep.subr.mxu0 0.0
    %208 = vmatpush1.msra.mxu0 %v106
    %209 = vmatprep.subr.mxu0 0.0
    %210 = vmatpush1.msra.mxu0 %v107
    %211 = vmatprep.subr.mxu0 0.0
    %212 = vmatpush1.msra.mxu0 %v108
    %213 = vmatprep.subr.mxu0 0.0
    %214 = vmatpush1.msra.mxu0 %v109
    %215 = vmatprep.subr.mxu0 0.0
    %216 = vmatpush1.msra.mxu0 %v110
    %217 = vmatprep.subr.mxu0 0.0
    %218 = vmatpush1.msra.mxu0 %v111
    %219 = vmatprep.subr.mxu0 0.0
    %220 = vmatpush1.msra.mxu0 0.0
    %221 = vmatprep.subr.mxu0 0.0
    %222 = vmatpush1.msra.mxu0 0.0
    %223 = vmatprep.subr.mxu0 0.0
    %224 = vmatpush1.msra.mxu0 0.0
    %225 = vmatprep.subr.mxu0 0.0
    %226 = vmatpush1.msra.mxu0 0.0
    %227 = vmatprep.subr.mxu0 0.0
    %228 = vmatpush1.msra.mxu0 0.0
    %229 = vmatprep.subr.mxu0 0.0
    %230 = vmatpush1.msra.mxu0 0.0
    %231 = vmatprep.subr.mxu0 0.0
    %232 = vmatpush1.msra.mxu0 0.0
    %233 = vmatprep.subr.mxu0 0.0
    %234 = vmatpush1.msra.mxu0 0.0
    %235 = vmatprep.subr.mxu0 0.0
    %236 = vmatpush1.msra.mxu0 0.0
    %237 = vmatprep.subr.mxu0 0.0
    %238 = vmatpush1.msra.mxu0 0.0
    %239 = vmatprep.subr.mxu0 0.0
    %240 = vmatpush1.msra.mxu0 0.0
    %241 = vmatprep.subr.mxu0 0.0
    %242 = vmatpush1.msra.mxu0 0.0
    %243 = vmatprep.subr.mxu0 0.0
    %244 = vmatpush1.msra.mxu0 0.0
    %245 = vmatprep.subr.mxu0 0.0
    %246 = vmatpush1.msra.mxu0 0.0
    %247 = vmatprep.subr.mxu0 0.0
    %248 = vmatpush1.msra.mxu0 0.0
    %249 = vmatprep.subr.mxu0 0.0
    %250 = vmatpush1.msra.mxu0 0.0
    %251 = vmatprep.mubr.f32.mxu0 0.0
    %252 = vmatmul.mubr.f32.gmra.mrb[0].mxu0 %v62
    %v253 = vpop.f32.mrb[0].mxu0
    %v254 = vadd.f32 %v179, %v253
    %v255 = vpop.f32.mrb[0].mxu0
    %256 = vmatprep.mubr.f32.mxu0 0.0
    %257 = vmatmul.mubr.f32.gmra.mrb[0].mxu0 %v63
    %v258 = vpop.f32.mrb[0].mxu0
    %v259 = vadd.f32 %v184, %v258
    %v260 = vpop.f32.mrb[0].mxu0
    %261 = vdwg.mxu0
    %vm262 = vcmask 261120
    %263 = vst.msk [vmem:[#allocation2] sm:$0xff] %vm262, %v254
    %264 = vst.msk [vmem:[#allocation2 + $0x8] sm:$0xff] %vm262, %v259
    // Predicated region
    $region10: #{tpu_custom_call.1} parent=1 // pred_check
      _
    $region11: #{tpu_custom_call.1} parent=1 // pred_check_branch
      %266 = sbr.rel (0) target = $region13
    $region12: #{tpu_custom_call.1} parent=1 // pred_region
      %s268 = ssub.s32 256, 256
      %269 = vsyncadd [#allocation3], %s268
      %s270 = sshll.u32 [#allocation2], 4
      %s271 = int_to_ptr.vmem [resolvable:$true] %s270
      %276 = dma.vmem_to_hbm [thread:$0]  %s271, 256, %s2, [#allocation3], 128, 128, 8
    $region13: #{tpu_custom_call.1} parent=1 // pred_fallthru
      _
    // Predicated region
    $region14: #{tpu_custom_call.1} parent=1 // pred_check
      _
    $region15: #{tpu_custom_call.1} parent=1 // pred_check_branch
      %278 = sbr.rel (0) target = $region17
    $region16: #{tpu_custom_call.1} parent=1 // pred_region
      %279 = dma.done [#allocation3], 256
    $region17: #{tpu_custom_call.1} parent=1 // pred_fallthru
      _
    %280 = vsyncpa [#allocation3], 1

</llo_original>
